<compile_context>
chip_gen: v7x
topology: tpu7x:2x2x1
jax: 0.10.0
libtpu: 0.0.40
codegen_flags: <defaults>
</compile_context>

<pallas_src>
import jax
import jax.numpy as jnp
from jax.experimental import pallas as pl
from jax.experimental.pallas import tpu as pltpu


# ----------------------------------------------------------------------------
# FIR coefficients copied from the PyTorch module __init__ (PFir3p / PFir4p are
# (10, 1) columns, PFir5p is (1, 1)).  Kept as Python floats so they lower to
# splat immediates inside the kernel (truly "baked in", zero DMA).
# ----------------------------------------------------------------------------
PFIR3 = (0.03213246539235115, -0.021538889035582542, 0.053095363080501556,
         0.34138908982276917, 0.11427462100982666, 0.6046465039253235,
         0.38414159417152405, 0.5539029836654663, 0.856288731098175,
         0.6727710962295532)
PFIR4 = (-0.8496224284172058, -0.8890238404273987, -0.730859100818634,
         -0.47441890835762024, -0.08027598261833191, -0.009404491633176804,
         0.10820397734642029, 0.8905107378959656, 1.0606800317764282,
         0.9743391871452332)
PFIR5 = 0.14562338590621948

WIN = 10               # theta FIR window length
TORQUE_ROW = WIN       # row 10 of the packed slab holds torque[:, 0]
SLAB_ROWS = 16         # 10 theta + 1 torque + 5 zero rows -> 2 f32 sublane tiles


# ----------------------------------------------------------------------------
# Kernel: one packed input slab (SLAB_ROWS, LB), one lane-dense output (1, LB).
# ----------------------------------------------------------------------------
def tracer_kernel(x_ref, out_ref):
    # Torque term (row 10), coefficient as an immediate.
    acc = x_ref[TORQUE_ROW:TORQUE_ROW + 1, :] * PFIR5                  # (1, LB)
    # Fused sin-FIR + theta-FIR: unrolled weighted accumulation over the
    # 10 window rows (sublanes).  All compute is VPU/EUP; no MXU.
    for r in range(WIN):
        row = x_ref[r:r + 1, :]                                        # (1, LB)
        acc = acc + jnp.sin(row) * PFIR3[r] + row * PFIR4[r]
    out_ref[...] = acc                                                 # (1, LB)


def _round_up(x, m):
    return ((x + m - 1) // m) * m


def tracer_forward(kwargs, *, lane_block=1024):
    """JAX/Pallas re-implementation of TracerModel.forward.

    kwargs: dict with
      'torque': (B, Tw, 1) with Tw >= 1
      'theta' : (B, Tt, 1) with Tt >= 10
      'omega' : (B, To, 1) with To >= 1
    Returns the same nested-dict structure as the PyTorch module.
    """
    torque = kwargs["torque"]
    theta = kwargs["theta"]
    omega = kwargs["omega"]
    B = theta.shape[0]

    # ---- glue (plain XLA): slice the windows, squeeze the feature dim, pack
    # torque into the same slab as theta, transpose so batch sits on lanes.
    theta_win = theta[:, 0:WIN, 0].astype(jnp.float32)                 # (B, 10)
    torque_win = torque[:, 0:1, 0].astype(jnp.float32)                 # (B, 1)
    pad_rows = jnp.zeros((B, SLAB_ROWS - WIN - 1), jnp.float32)        # (B, 5)
    slab = jnp.concatenate([theta_win, torque_win, pad_rows], axis=1)  # (B, 16)
    slab_t = slab.T                                                    # (16, B)

    # Lane-dense batch tiling: block lane dim must be a multiple of 128.
    lb = min(lane_block, _round_up(max(B, 1), 128))
    b_pad = _round_up(B, lb)
    if b_pad != B:
        slab_t = jnp.pad(slab_t, ((0, 0), (0, b_pad - B)))             # (16, B_pad)

    out = pl.pallas_call(
        tracer_kernel,
        out_shape=jax.ShapeDtypeStruct((1, b_pad), jnp.float32),
        grid=(b_pad // lb,),
        in_specs=[pl.BlockSpec((SLAB_ROWS, lb), lambda i: (0, i))],
        out_specs=pl.BlockSpec((1, lb), lambda i: (0, i)),
        compiler_params=pltpu.CompilerParams(
            dimension_semantics=("parallel",)),
    )(slab_t)                                                          # (1, B_pad)

    omega_pred = out[0, :B].reshape(B, 1, 1)       # matches .view(B, 1, 1)
    sample_part_17 = omega[:, 0:1, :]              # (B, 1, 1)

    return ({"omega_pred": omega_pred},
            {"SamplePart17": sample_part_17, "omega_pred": omega_pred})


if __name__ == "__main__":
    key = jax.random.PRNGKey(0)
    k1, k2, k3 = jax.random.split(key, 3)

    B = 2
    torque = jax.random.normal(k1, (B, 1, 1), dtype=jnp.float32)
    theta = jax.random.normal(k2, (B, 10, 1), dtype=jnp.float32)
    omega = jax.random.normal(k3, (B, 1, 1), dtype=jnp.float32)

    inputs = {"torque": torque, "theta": theta, "omega": omega}

    out_main, out_aux = tracer_forward(inputs)
    omega_pred = jax.block_until_ready(out_main["omega_pred"])

    # Pure-JAX reference check.
    w3 = jnp.array(PFIR3, jnp.float32).reshape(WIN, 1)
    w4 = jnp.array(PFIR4, jnp.float32).reshape(WIN, 1)
    ref = (jnp.sin(theta[:, 0:WIN, 0]) @ w3
           + theta[:, 0:WIN, 0] @ w4
           + torque[:, 0:1, 0] * PFIR5).reshape(B, 1, 1)

    assert omega_pred.shape == (B, 1, 1)
    assert jnp.allclose(omega_pred, ref, atol=1e-5, rtol=1e-5)
    assert out_aux["SamplePart17"].shape == (B, 1, 1)
    assert jnp.allclose(out_aux["omega_pred"], ref, atol=1e-5, rtol=1e-5)

    print("KERNEL_OK")
</pallas_src>

<mosaic_0001>
module attributes {stable_mosaic.version = 11 : i64} {
  func.func @tracer_kernel(%arg0: i32, %arg1: memref<16x128xf32, #tpu.memory_space<vmem>>, %arg2: memref<1x128xf32, #tpu.memory_space<vmem>>) attributes {dimension_semantics = [#tpu.dimension_semantics<parallel>], iteration_bounds = array<i64: 1>, scalar_prefetch = 0 : i64, scratch_operands = 0 : i64, tpu.core_type = #tpu.core_type<tc>, window_params = [{transform_indices = @transform_0, window_bounds = array<i64: 16, 128>}, {transform_indices = @transform_1, window_bounds = array<i64: 1, 128>}]} {
    %c10 = arith.constant 10 : index
    %c0 = arith.constant 0 : index
    %0 = vector.load %arg1[%c10, %c0] : memref<16x128xf32, #tpu.memory_space<vmem>>, vector<1x128xf32>
    %cst = arith.constant 0.145623386 : f32
    %1 = vector.broadcast %cst : f32 to vector<1x128xf32>
    %2 = arith.mulf %0, %1 : vector<1x128xf32>
    %c0_0 = arith.constant 0 : index
    %c0_1 = arith.constant 0 : index
    %3 = vector.load %arg1[%c0_0, %c0_1] : memref<16x128xf32, #tpu.memory_space<vmem>>, vector<1x128xf32>
    %4 = math.sin %3 : vector<1x128xf32>
    %cst_2 = arith.constant 0.0321324654 : f32
    %5 = vector.broadcast %cst_2 : f32 to vector<1x128xf32>
    %6 = arith.mulf %4, %5 : vector<1x128xf32>
    %7 = arith.addf %2, %6 : vector<1x128xf32>
    %cst_3 = arith.constant -0.849622428 : f32
    %8 = vector.broadcast %cst_3 : f32 to vector<1x128xf32>
    %9 = arith.mulf %3, %8 : vector<1x128xf32>
    %10 = arith.addf %7, %9 : vector<1x128xf32>
    %c1 = arith.constant 1 : index
    %c0_4 = arith.constant 0 : index
    %11 = vector.load %arg1[%c1, %c0_4] : memref<16x128xf32, #tpu.memory_space<vmem>>, vector<1x128xf32>
    %12 = math.sin %11 : vector<1x128xf32>
    %cst_5 = arith.constant -0.021538889 : f32
    %13 = vector.broadcast %cst_5 : f32 to vector<1x128xf32>
    %14 = arith.mulf %12, %13 : vector<1x128xf32>
    %15 = arith.addf %10, %14 : vector<1x128xf32>
    %cst_6 = arith.constant -0.88902384 : f32
    %16 = vector.broadcast %cst_6 : f32 to vector<1x128xf32>
    %17 = arith.mulf %11, %16 : vector<1x128xf32>
    %18 = arith.addf %15, %17 : vector<1x128xf32>
    %c2 = arith.constant 2 : index
    %c0_7 = arith.constant 0 : index
    %19 = vector.load %arg1[%c2, %c0_7] : memref<16x128xf32, #tpu.memory_space<vmem>>, vector<1x128xf32>
    %20 = math.sin %19 : vector<1x128xf32>
    %cst_8 = arith.constant 0.0530953631 : f32
    %21 = vector.broadcast %cst_8 : f32 to vector<1x128xf32>
    %22 = arith.mulf %20, %21 : vector<1x128xf32>
    %23 = arith.addf %18, %22 : vector<1x128xf32>
    %cst_9 = arith.constant -0.7308591 : f32
    %24 = vector.broadcast %cst_9 : f32 to vector<1x128xf32>
    %25 = arith.mulf %19, %24 : vector<1x128xf32>
    %26 = arith.addf %23, %25 : vector<1x128xf32>
    %c3 = arith.constant 3 : index
    %c0_10 = arith.constant 0 : index
    %27 = vector.load %arg1[%c3, %c0_10] : memref<16x128xf32, #tpu.memory_space<vmem>>, vector<1x128xf32>
    %28 = math.sin %27 : vector<1x128xf32>
    %cst_11 = arith.constant 0.34138909 : f32
    %29 = vector.broadcast %cst_11 : f32 to vector<1x128xf32>
    %30 = arith.mulf %28, %29 : vector<1x128xf32>
    %31 = arith.addf %26, %30 : vector<1x128xf32>
    %cst_12 = arith.constant -0.474418908 : f32
    %32 = vector.broadcast %cst_12 : f32 to vector<1x128xf32>
    %33 = arith.mulf %27, %32 : vector<1x128xf32>
    %34 = arith.addf %31, %33 : vector<1x128xf32>
    %c4 = arith.constant 4 : index
    %c0_13 = arith.constant 0 : index
    %35 = vector.load %arg1[%c4, %c0_13] : memref<16x128xf32, #tpu.memory_space<vmem>>, vector<1x128xf32>
    %36 = math.sin %35 : vector<1x128xf32>
    %cst_14 = arith.constant 0.114274621 : f32
    %37 = vector.broadcast %cst_14 : f32 to vector<1x128xf32>
    %38 = arith.mulf %36, %37 : vector<1x128xf32>
    %39 = arith.addf %34, %38 : vector<1x128xf32>
    %cst_15 = arith.constant -0.0802759826 : f32
    %40 = vector.broadcast %cst_15 : f32 to vector<1x128xf32>
    %41 = arith.mulf %35, %40 : vector<1x128xf32>
    %42 = arith.addf %39, %41 : vector<1x128xf32>
    %c5 = arith.constant 5 : index
    %c0_16 = arith.constant 0 : index
    %43 = vector.load %arg1[%c5, %c0_16] : memref<16x128xf32, #tpu.memory_space<vmem>>, vector<1x128xf32>
    %44 = math.sin %43 : vector<1x128xf32>
    %cst_17 = arith.constant 0.604646503 : f32
    %45 = vector.broadcast %cst_17 : f32 to vector<1x128xf32>
    %46 = arith.mulf %44, %45 : vector<1x128xf32>
    %47 = arith.addf %42, %46 : vector<1x128xf32>
    %cst_18 = arith.constant -0.00940449163 : f32
    %48 = vector.broadcast %cst_18 : f32 to vector<1x128xf32>
    %49 = arith.mulf %43, %48 : vector<1x128xf32>
    %50 = arith.addf %47, %49 : vector<1x128xf32>
    %c6 = arith.constant 6 : index
    %c0_19 = arith.constant 0 : index
    %51 = vector.load %arg1[%c6, %c0_19] : memref<16x128xf32, #tpu.memory_space<vmem>>, vector<1x128xf32>
    %52 = math.sin %51 : vector<1x128xf32>
    %cst_20 = arith.constant 0.384141594 : f32
    %53 = vector.broadcast %cst_20 : f32 to vector<1x128xf32>
    %54 = arith.mulf %52, %53 : vector<1x128xf32>
    %55 = arith.addf %50, %54 : vector<1x128xf32>
    %cst_21 = arith.constant 0.108203977 : f32
    %56 = vector.broadcast %cst_21 : f32 to vector<1x128xf32>
    %57 = arith.mulf %51, %56 : vector<1x128xf32>
    %58 = arith.addf %55, %57 : vector<1x128xf32>
    %c7 = arith.constant 7 : index
    %c0_22 = arith.constant 0 : index
    %59 = vector.load %arg1[%c7, %c0_22] : memref<16x128xf32, #tpu.memory_space<vmem>>, vector<1x128xf32>
    %60 = math.sin %59 : vector<1x128xf32>
    %cst_23 = arith.constant 5.539030e-01 : f32
    %61 = vector.broadcast %cst_23 : f32 to vector<1x128xf32>
    %62 = arith.mulf %60, %61 : vector<1x128xf32>
    %63 = arith.addf %58, %62 : vector<1x128xf32>
    %cst_24 = arith.constant 0.890510737 : f32
    %64 = vector.broadcast %cst_24 : f32 to vector<1x128xf32>
    %65 = arith.mulf %59, %64 : vector<1x128xf32>
    %66 = arith.addf %63, %65 : vector<1x128xf32>
    %c8 = arith.constant 8 : index
    %c0_25 = arith.constant 0 : index
    %67 = vector.load %arg1[%c8, %c0_25] : memref<16x128xf32, #tpu.memory_space<vmem>>, vector<1x128xf32>
    %68 = math.sin %67 : vector<1x128xf32>
    %cst_26 = arith.constant 0.856288731 : f32
    %69 = vector.broadcast %cst_26 : f32 to vector<1x128xf32>
    %70 = arith.mulf %68, %69 : vector<1x128xf32>
    %71 = arith.addf %66, %70 : vector<1x128xf32>
    %cst_27 = arith.constant 1.060680e+00 : f32
    %72 = vector.broadcast %cst_27 : f32 to vector<1x128xf32>
    %73 = arith.mulf %67, %72 : vector<1x128xf32>
    %74 = arith.addf %71, %73 : vector<1x128xf32>
    %c9 = arith.constant 9 : index
    %c0_28 = arith.constant 0 : index
    %75 = vector.load %arg1[%c9, %c0_28] : memref<16x128xf32, #tpu.memory_space<vmem>>, vector<1x128xf32>
    %76 = math.sin %75 : vector<1x128xf32>
    %cst_29 = arith.constant 0.672771096 : f32
    %77 = vector.broadcast %cst_29 : f32 to vector<1x128xf32>
    %78 = arith.mulf %76, %77 : vector<1x128xf32>
    %79 = arith.addf %74, %78 : vector<1x128xf32>
    %cst_30 = arith.constant 0.974339187 : f32
    %80 = vector.broadcast %cst_30 : f32 to vector<1x128xf32>
    %81 = arith.mulf %75, %80 : vector<1x128xf32>
    %82 = arith.addf %79, %81 : vector<1x128xf32>
    %c0_31 = arith.constant 0 : index
    %c0_32 = arith.constant 0 : index
    %83 = vector.load %arg2[%c0_31, %c0_32] : memref<1x128xf32, #tpu.memory_space<vmem>>, vector<1x128xf32>
    tpu.vector_store %arg2[%c0_31, %c0_32], %82 {strides = array<i32>} : memref<1x128xf32, #tpu.memory_space<vmem>>, vector<1x128xf32>,
    return
  }
  func.func @transform_0(%arg0: i32) -> (i32, i32) {
    %c0_i32 = arith.constant 0 : i32
    %c0_i32_0 = arith.constant 0 : i32
    return %c0_i32, %arg0 : i32, i32
  }
  func.func @transform_1(%arg0: i32) -> (i32, i32) {
    %c0_i32 = arith.constant 0 : i32
    %c0_i32_0 = arith.constant 0 : i32
    return %c0_i32, %arg0 : i32, i32
  }
}

</mosaic_0001>

<llo_original>
// kernel: tpu_custom_call.1
$region0: #{tpu_custom_call.1}
  #allocation0 [shape = 'u32[]', space=smem, size = 0x4, offset = 0x4, fixed_abs, tag = 'smem constant byte address 0x4 - core index']
  #allocation1 [shape = 'u32[144,128]{1,0:T(1,128)}', space=vmem, size = 0x12000, scoped, tag = 'internal scratch']
  %s0 = inlined_call_operand.hbm [shape: f32[16,128], index: 0, kind: input, shape index: {}]
  %s1 = inlined_call_operand.hbm [shape: f32[1,128], index: 1, kind: output, shape index: {}]
  %s2 = sld [smem:[#allocation0]]
  $region18: #{tpu_custom_call.1} parent=0
    _
  %s4 = ssub.s32 1, %s2
  %s5 = scalar_select 0, %s4, %s2
  $region1: #{tpu_custom_call.1} parent=0
    #allocation2 [shape = 'u8[8192]{0}', space=vmem, size = 0x2000, scoped, tag = 'input window, operand 0, single buffered']
    #allocation3 [shape = 's32[1]{0}', space=sflag, size = 0x4, scoped, tag = 'scoped memory for tpu_custom_call.1']
    #allocation4 [shape = 's32[1]{0}', space=sflag, size = 0x4, scoped, tag = 'scoped memory for tpu_custom_call.1']
    #allocation5 [shape = 'u8[512]{0}', space=vmem, size = 0x400, scoped, tag = 'output window, operand 0, single buffered']
    %6 = vsyncpa [#allocation3], 0
    %7 = vsyncpa [#allocation4], 0
    // Predicated region
    $region2: #{tpu_custom_call.1} parent=1 // pred_check
      _
    $region3: #{tpu_custom_call.1} parent=1 // pred_check_branch
      %9 = sbr.rel (0) target = $region5
    $region4: #{tpu_custom_call.1} parent=1 // pred_region
      %s11 = ssub.s32 256, 256
      %12 = vsyncadd [#allocation3], %s11
      %s13 = sshll.u32 [#allocation2], 4
      %s14 = int_to_ptr.vmem [resolvable:$true] %s13
      %19 = dma.hbm_to_vmem [thread:$0]  %s0, 256, %s14, [#allocation3], 128, 128, 8
    $region5: #{tpu_custom_call.1} parent=1 // pred_fallthru
      _
    // Predicated region
    $region6: #{tpu_custom_call.1} parent=1 // pred_check
      _
    $region7: #{tpu_custom_call.1} parent=1 // pred_check_branch
      %21 = sbr.rel (0) target = $region9
    $region8: #{tpu_custom_call.1} parent=1 // pred_region
      %22 = dma.done [#allocation3], 256
    $region9: #{tpu_custom_call.1} parent=1 // pred_fallthru
      _
    %v23 = vld [vmem:[#allocation2 + $0xa] sm:$0x1]
    %v24 = vmul.f32 %v23, 0.14562339
    %v25 = vld [vmem:[#allocation2] sm:$0x1]
    %v26 = vand.u32 2147483647, %v25
    %vm27 = vcmp.le.f32.partialorder %v26, 0.7853982
    %vm28 = vcmp.lt.s32.totalorder %v25, 0
    %v29 = vand.u32 %v25, 2139095040
    %v30 = vshrl.u32 %v29, 23
    %v31 = vsub.s32 %v30, 127
    %v32 = vand.u32 2147483647, %v25
    %v33 = vand.u32 %v32, 8388607
    %v34 = vor.u32 %v33, 8388608
    %v35 = vsub.s32 0, %v34
    %v36 = vadd.s32 %v31, 1
    %vm37 = vcmp.gt.s32.totalorder %v36, 0
    %v38 = vsel %vm37, %v36, 0
    %v39 = vshrl.u32 %v38, 5
    %v40 = vand.u32 %v38, 31
    %v41 = vsub.s32 32, %v40
    %v42 = vshrl.u32 683565275, %v41
    %v43 = vshll.u32 683565275, %v40
    %v44 = vshrl.u32 2475754826, %v41
    %v45 = vor.u32 %v43, %v44
    %v46 = vshll.u32 2475754826, %v40
    %v47 = vshrl.u32 2131351028, %v41
    %v48 = vor.u32 %v46, %v47
    %v49 = vshll.u32 2131351028, %v40
    %v50 = vshrl.u32 2102212464, %v41
    %v51 = vor.u32 %v49, %v50
    %v52 = vshll.u32 2102212464, %v40
    %v53 = vshrl.u32 920167782, %v41
    %v54 = vor.u32 %v52, %v53
    %v55 = vshll.u32 920167782, %v40
    %v56 = vshrl.u32 1326507024, %v41
    %v57 = vor.u32 %v55, %v56
    %vm58 = vcmp.lt.s32.totalorder %v39, 1
    %vm59 = vcmp.lt.s32.totalorder %v39, 2
    %vm60 = vcmp.lt.s32.totalorder %v39, 3
    %vm61 = vcmp.lt.s32.totalorder %v39, 4
    %v62 = vsel %vm58, %v42, %v45
    %v63 = vsel %vm61, %v51, 2102212464
    %v64 = vsel %vm60, %v48, %v63
    %v65 = vsel %vm59, %v62, %v64
    %v66 = vsel %vm58, %v45, %v48
    %v67 = vsel %vm61, %v54, 920167782
    %v68 = vsel %vm60, %v51, %v67
    %v69 = vsel %vm59, %v66, %v68
    %v70 = vsel %vm58, %v48, %v51
    %v71 = vsel %vm61, %v57, 1326507024
    %v72 = vsel %vm60, %v54, %v71
    %v73 = vsel %vm59, %v70, %v72
    %v74 = vshll.u32 %v34, 8
    %v75 = vmul.u32.u64.compose %v74, %v73
    %v76 = vextract.low.u32 %v75
    %v77 = vextract.high.u32 %v75
    %v78 = vmul.u32.u64.compose %v74, %v69
    %v79 = vextract.low.u32 %v78
    %v80 = vextract.high.u32 %v78
    %v81 = vmul.u32 %v74, %v65
    %v82 = vadd.s32 %v77, %v79
    %vm83 = vc.u32 %v77, %v79
    %v84 = vadd.s32 %v80, 1
    %v85 = vsel %vm83, %v84, %v80
    %v86 = vadd.s32 %v81, %v85
    %v87 = vadd.s32 %v86, 536870912
    %v88 = vshrl.u32 %v87, 30
    %v89 = vshll.u32 %v88, 30
    %v90 = vsub.s32 %v86, %v89
    %vm91 = vcmp.lt.s32.totalorder %v90, 0
    %v92 = vsub.s32 0, %v90
    %v93 = vsel %vm91, %v92, %v90
    %v94 = vclz %v93
    %v95 = vsub.s32 %v94, 2
    %vm96 = vcmp.gt.s32.totalorder 0, %v95
    %v97 = vsel %vm96, 0, %v95
    %v98 = vsub.s32 32, %v97
    %v99 = vshll.u32 %v90, %v97
    %v100 = vshrl.u32 %v82, %v98
    %v101 = vor.u32 %v99, %v100
    %v102 = vsub.s32 4294967266, %v97
    %v103 = vadd.s32 %v102, 127
    %v104 = vshll.u32 %v103, 23
    %v105 = vor.u32 4788187, %v104
    %v106 = vand.u32 2147483647, %v105
    %v108 = vcvt.s32.f32 %v101
    %v109 = vmul.f32 %v108, %v106
    %v110 = vxor.u32 %v109, 2147483648
    %v111 = vsel %vm28, %v110, %v109
    %v112 = vsub.s32 4, %v88
    %v113 = vsel %vm28, %v112, %v88
    %v114 = vsel %vm27, %v25, %v111
    %v115 = vsel %vm27, 0, %v113
    %v116 = vcosq.f32.pop %v114
    %v117 = vsinq.f32.pop %v114
    %vm118 = vweird.f32 %v25
    %v119 = vadd.s32 %v115, 3
    %v120 = vand.u32 %v119, 3
    %vm121 = vcmp.lt.s32.totalorder %v120, 2
    %vm122 = vcmp.eq.s32.totalorder %v120, 0
    %v123 = vxor.u32 %v117, 2147483648
    %v124 = vsel %vm122, %v116, %v123
    %vm125 = vcmp.eq.s32.totalorder %v120, 2
    %v126 = vxor.u32 %v116, 2147483648
    %v127 = vsel %vm125, %v126, %v117
    %v128 = vsel %vm121, %v124, %v127
    %v129 = vsel %vm118, nan, %v128
    %v130 = vmul.f32 %v129, 0.032132465
    %v131 = vadd.f32 %v24, %v130
    %v132 = vmul.f32 %v25, -0.8496224
    %v133 = vadd.f32 %v131, %v132
    %v134 = vld [vmem:[#allocation2 + $0x1] sm:$0x1]
    %v135 = vand.u32 2147483647, %v134
    %vm136 = vcmp.le.f32.partialorder %v135, 0.7853982
    %vm137 = vcmp.lt.s32.totalorder %v134, 0
    %v138 = vand.u32 %v134, 2139095040
    %v139 = vshrl.u32 %v138, 23
    %v140 = vsub.s32 %v139, 127
    %v141 = vand.u32 2147483647, %v134
    %v142 = vand.u32 %v141, 8388607
    %v143 = vor.u32 %v142, 8388608
    %v144 = vsub.s32 0, %v143
    %v145 = vadd.s32 %v140, 1
    %vm146 = vcmp.gt.s32.totalorder %v145, 0
    %v147 = vsel %vm146, %v145, 0
    %v148 = vshrl.u32 %v147, 5
    %v149 = vand.u32 %v147, 31
    %v150 = vsub.s32 32, %v149
    %v151 = vshrl.u32 683565275, %v150
    %v152 = vshll.u32 683565275, %v149
    %v153 = vshrl.u32 2475754826, %v150
    %v154 = vor.u32 %v152, %v153
    %v155 = vshll.u32 2475754826, %v149
    %v156 = vshrl.u32 2131351028, %v150
    %v157 = vor.u32 %v155, %v156
    %v158 = vshll.u32 2131351028, %v149
    %v159 = vshrl.u32 2102212464, %v150
    %v160 = vor.u32 %v158, %v159
    %v161 = vshll.u32 2102212464, %v149
    %v162 = vshrl.u32 920167782, %v150
    %v163 = vor.u32 %v161, %v162
    %v164 = vshll.u32 920167782, %v149
    %v165 = vshrl.u32 1326507024, %v150
    %v166 = vor.u32 %v164, %v165
    %vm167 = vcmp.lt.s32.totalorder %v148, 1
    %vm168 = vcmp.lt.s32.totalorder %v148, 2
    %vm169 = vcmp.lt.s32.totalorder %v148, 3
    %vm170 = vcmp.lt.s32.totalorder %v148, 4
    %v171 = vsel %vm167, %v151, %v154
    %v172 = vsel %vm170, %v160, 2102212464
    %v173 = vsel %vm169, %v157, %v172
    %v174 = vsel %vm168, %v171, %v173
    %v175 = vsel %vm167, %v154, %v157
    %v176 = vsel %vm170, %v163, 920167782
    %v177 = vsel %vm169, %v160, %v176
    %v178 = vsel %vm168, %v175, %v177
    %v179 = vsel %vm167, %v157, %v160
    %v180 = vsel %vm170, %v166, 1326507024
    %v181 = vsel %vm169, %v163, %v180
    %v182 = vsel %vm168, %v179, %v181
    %v183 = vshll.u32 %v143, 8
    %v184 = vmul.u32.u64.compose %v183, %v182
    %v185 = vextract.low.u32 %v184
    %v186 = vextract.high.u32 %v184
    %v187 = vmul.u32.u64.compose %v183, %v178
    %v188 = vextract.low.u32 %v187
    %v189 = vextract.high.u32 %v187
    %v190 = vmul.u32 %v183, %v174
    %v191 = vadd.s32 %v186, %v188
    %vm192 = vc.u32 %v186, %v188
    %v193 = vadd.s32 %v189, 1
    %v194 = vsel %vm192, %v193, %v189
    %v195 = vadd.s32 %v190, %v194
    %v196 = vadd.s32 %v195, 536870912
    %v197 = vshrl.u32 %v196, 30
    %v198 = vshll.u32 %v197, 30
    %v199 = vsub.s32 %v195, %v198
    %vm200 = vcmp.lt.s32.totalorder %v199, 0
    %v201 = vsub.s32 0, %v199
    %v202 = vsel %vm200, %v201, %v199
    %v203 = vclz %v202
    %v204 = vsub.s32 %v203, 2
    %vm205 = vcmp.gt.s32.totalorder 0, %v204
    %v206 = vsel %vm205, 0, %v204
    %v207 = vsub.s32 32, %v206
    %v208 = vshll.u32 %v199, %v206
    %v209 = vshrl.u32 %v191, %v207
    %v210 = vor.u32 %v208, %v209
    %v211 = vsub.s32 4294967266, %v206
    %v212 = vadd.s32 %v211, 127
    %v213 = vshll.u32 %v212, 23
    %v214 = vor.u32 4788187, %v213
    %v215 = vand.u32 2147483647, %v214
    %v217 = vcvt.s32.f32 %v210
    %v218 = vmul.f32 %v217, %v215
    %v219 = vxor.u32 %v218, 2147483648
    %v220 = vsel %vm137, %v219, %v218
    %v221 = vsub.s32 4, %v197
    %v222 = vsel %vm137, %v221, %v197
    %v223 = vsel %vm136, %v134, %v220
    %v224 = vsel %vm136, 0, %v222
    %v225 = vcosq.f32.pop %v223
    %v226 = vsinq.f32.pop %v223
    %vm227 = vweird.f32 %v134
    %v228 = vadd.s32 %v224, 3
    %v229 = vand.u32 %v228, 3
    %vm230 = vcmp.lt.s32.totalorder %v229, 2
    %vm231 = vcmp.eq.s32.totalorder %v229, 0
    %v232 = vxor.u32 %v226, 2147483648
    %v233 = vsel %vm231, %v225, %v232
    %vm234 = vcmp.eq.s32.totalorder %v229, 2
    %v235 = vxor.u32 %v225, 2147483648
    %v236 = vsel %vm234, %v235, %v226
    %v237 = vsel %vm230, %v233, %v236
    %v238 = vsel %vm227, nan, %v237
    %v239 = vmul.f32 %v238, -0.021538889
    %v240 = vadd.f32 %v133, %v239
    %v241 = vmul.f32 %v134, -0.88902384
    %v242 = vadd.f32 %v240, %v241
    %v243 = vld [vmem:[#allocation2 + $0x2] sm:$0x1]
    %v244 = vand.u32 2147483647, %v243
    %vm245 = vcmp.le.f32.partialorder %v244, 0.7853982
    %vm246 = vcmp.lt.s32.totalorder %v243, 0
    %v247 = vand.u32 %v243, 2139095040
    %v248 = vshrl.u32 %v247, 23
    %v249 = vsub.s32 %v248, 127
    %v250 = vand.u32 2147483647, %v243
    %v251 = vand.u32 %v250, 8388607
    %v252 = vor.u32 %v251, 8388608
    %v253 = vsub.s32 0, %v252
    %v254 = vadd.s32 %v249, 1
    %vm255 = vcmp.gt.s32.totalorder %v254, 0
    %v256 = vsel %vm255, %v254, 0
    %v257 = vshrl.u32 %v256, 5
    %v258 = vand.u32 %v256, 31
    %v259 = vsub.s32 32, %v258
    %v260 = vshrl.u32 683565275, %v259
    %v261 = vshll.u32 683565275, %v258
    %v262 = vshrl.u32 2475754826, %v259
    %v263 = vor.u32 %v261, %v262
    %v264 = vshll.u32 2475754826, %v258
    %v265 = vshrl.u32 2131351028, %v259
    %v266 = vor.u32 %v264, %v265
    %v267 = vshll.u32 2131351028, %v258
    %v268 = vshrl.u32 2102212464, %v259
    %v269 = vor.u32 %v267, %v268
    %v270 = vshll.u32 2102212464, %v258
    %v271 = vshrl.u32 920167782, %v259
    %v272 = vor.u32 %v270, %v271
    %v273 = vshll.u32 920167782, %v258
    %v274 = vshrl.u32 1326507024, %v259
    %v275 = vor.u32 %v273, %v274
    %vm276 = vcmp.lt.s32.totalorder %v257, 1
    %vm277 = vcmp.lt.s32.totalorder %v257, 2
    %vm278 = vcmp.lt.s32.totalorder %v257, 3
    %vm279 = vcmp.lt.s32.totalorder %v257, 4
    %v280 = vsel %vm276, %v260, %v263
    %v281 = vsel %vm279, %v269, 2102212464
    %v282 = vsel %vm278, %v266, %v281
    %v283 = vsel %vm277, %v280, %v282
    %v284 = vsel %vm276, %v263, %v266
    %v285 = vsel %vm279, %v272, 920167782
    %v286 = vsel %vm278, %v269, %v285
    %v287 = vsel %vm277, %v284, %v286
    %v288 = vsel %vm276, %v266, %v269
    %v289 = vsel %vm279, %v275, 1326507024
    %v290 = vsel %vm278, %v272, %v289
    %v291 = vsel %vm277, %v288, %v290
    %v292 = vshll.u32 %v252, 8
    %v293 = vmul.u32.u64.compose %v292, %v291
    %v294 = vextract.low.u32 %v293
    %v295 = vextract.high.u32 %v293
    %v296 = vmul.u32.u64.compose %v292, %v287
    %v297 = vextract.low.u32 %v296
    %v298 = vextract.high.u32 %v296
    %v299 = vmul.u32 %v292, %v283
    %v300 = vadd.s32 %v295, %v297
    %vm301 = vc.u32 %v295, %v297
    %v302 = vadd.s32 %v298, 1
    %v303 = vsel %vm301, %v302, %v298
    %v304 = vadd.s32 %v299, %v303
    %v305 = vadd.s32 %v304, 536870912
    %v306 = vshrl.u32 %v305, 30
    %v307 = vshll.u32 %v306, 30
    %v308 = vsub.s32 %v304, %v307
    %vm309 = vcmp.lt.s32.totalorder %v308, 0
    %v310 = vsub.s32 0, %v308
    %v311 = vsel %vm309, %v310, %v308
    %v312 = vclz %v311
    %v313 = vsub.s32 %v312, 2
    %vm314 = vcmp.gt.s32.totalorder 0, %v313
    %v315 = vsel %vm314, 0, %v313
    %v316 = vsub.s32 32, %v315
    %v317 = vshll.u32 %v308, %v315
    %v318 = vshrl.u32 %v300, %v316
    %v319 = vor.u32 %v317, %v318
    %v320 = vsub.s32 4294967266, %v315
    %v321 = vadd.s32 %v320, 127
    %v322 = vshll.u32 %v321, 23
    %v323 = vor.u32 4788187, %v322
    %v324 = vand.u32 2147483647, %v323
    %v326 = vcvt.s32.f32 %v319
    %v327 = vmul.f32 %v326, %v324
    %v328 = vxor.u32 %v327, 2147483648
    %v329 = vsel %vm246, %v328, %v327
    %v330 = vsub.s32 4, %v306
    %v331 = vsel %vm246, %v330, %v306
    %v332 = vsel %vm245, %v243, %v329
    %v333 = vsel %vm245, 0, %v331
    %v334 = vcosq.f32.pop %v332
    %v335 = vsinq.f32.pop %v332
    %vm336 = vweird.f32 %v243
    %v337 = vadd.s32 %v333, 3
    %v338 = vand.u32 %v337, 3
    %vm339 = vcmp.lt.s32.totalorder %v338, 2
    %vm340 = vcmp.eq.s32.totalorder %v338, 0
    %v341 = vxor.u32 %v335, 2147483648
    %v342 = vsel %vm340, %v334, %v341
    %vm343 = vcmp.eq.s32.totalorder %v338, 2
    %v344 = vxor.u32 %v334, 2147483648
    %v345 = vsel %vm343, %v344, %v335
    %v346 = vsel %vm339, %v342, %v345
    %v347 = vsel %vm336, nan, %v346
    %v348 = vmul.f32 %v347, 0.053095363
    %v349 = vadd.f32 %v242, %v348
    %v350 = vmul.f32 %v243, -0.7308591
    %v351 = vadd.f32 %v349, %v350
    %v352 = vld [vmem:[#allocation2 + $0x3] sm:$0x1]
    %v353 = vand.u32 2147483647, %v352
    %vm354 = vcmp.le.f32.partialorder %v353, 0.7853982
    %vm355 = vcmp.lt.s32.totalorder %v352, 0
    %v356 = vand.u32 %v352, 2139095040
    %v357 = vshrl.u32 %v356, 23
    %v358 = vsub.s32 %v357, 127
    %v359 = vand.u32 2147483647, %v352
    %v360 = vand.u32 %v359, 8388607
    %v361 = vor.u32 %v360, 8388608
    %v362 = vsub.s32 0, %v361
    %v363 = vadd.s32 %v358, 1
    %vm364 = vcmp.gt.s32.totalorder %v363, 0
    %v365 = vsel %vm364, %v363, 0
    %v366 = vshrl.u32 %v365, 5
    %v367 = vand.u32 %v365, 31
    %v368 = vsub.s32 32, %v367
    %v369 = vshrl.u32 683565275, %v368
    %v370 = vshll.u32 683565275, %v367
    %v371 = vshrl.u32 2475754826, %v368
    %v372 = vor.u32 %v370, %v371
    %v373 = vshll.u32 2475754826, %v367
    %v374 = vshrl.u32 2131351028, %v368
    %v375 = vor.u32 %v373, %v374
    %v376 = vshll.u32 2131351028, %v367
    %v377 = vshrl.u32 2102212464, %v368
    %v378 = vor.u32 %v376, %v377
    %v379 = vshll.u32 2102212464, %v367
    %v380 = vshrl.u32 920167782, %v368
    %v381 = vor.u32 %v379, %v380
    %v382 = vshll.u32 920167782, %v367
    %v383 = vshrl.u32 1326507024, %v368
    %v384 = vor.u32 %v382, %v383
    %vm385 = vcmp.lt.s32.totalorder %v366, 1
    %vm386 = vcmp.lt.s32.totalorder %v366, 2
    %vm387 = vcmp.lt.s32.totalorder %v366, 3
    %vm388 = vcmp.lt.s32.totalorder %v366, 4
    %v389 = vsel %vm385, %v369, %v372
    %v390 = vsel %vm388, %v378, 2102212464
    %v391 = vsel %vm387, %v375, %v390
    %v392 = vsel %vm386, %v389, %v391
    %v393 = vsel %vm385, %v372, %v375
    %v394 = vsel %vm388, %v381, 920167782
    %v395 = vsel %vm387, %v378, %v394
    %v396 = vsel %vm386, %v393, %v395
    %v397 = vsel %vm385, %v375, %v378
    %v398 = vsel %vm388, %v384, 1326507024
    %v399 = vsel %vm387, %v381, %v398
    %v400 = vsel %vm386, %v397, %v399
    %v401 = vshll.u32 %v361, 8
    %v402 = vmul.u32.u64.compose %v401, %v400
    %v403 = vextract.low.u32 %v402
    %v404 = vextract.high.u32 %v402
    %v405 = vmul.u32.u64.compose %v401, %v396
    %v406 = vextract.low.u32 %v405
    %v407 = vextract.high.u32 %v405
    %v408 = vmul.u32 %v401, %v392
    %v409 = vadd.s32 %v404, %v406
    %vm410 = vc.u32 %v404, %v406
    %v411 = vadd.s32 %v407, 1
    %v412 = vsel %vm410, %v411, %v407
    %v413 = vadd.s32 %v408, %v412
    %v414 = vadd.s32 %v413, 536870912
    %v415 = vshrl.u32 %v414, 30
    %v416 = vshll.u32 %v415, 30
    %v417 = vsub.s32 %v413, %v416
    %vm418 = vcmp.lt.s32.totalorder %v417, 0
    %v419 = vsub.s32 0, %v417
    %v420 = vsel %vm418, %v419, %v417
    %v421 = vclz %v420
    %v422 = vsub.s32 %v421, 2
    %vm423 = vcmp.gt.s32.totalorder 0, %v422
    %v424 = vsel %vm423, 0, %v422
    %v425 = vsub.s32 32, %v424
    %v426 = vshll.u32 %v417, %v424
    %v427 = vshrl.u32 %v409, %v425
    %v428 = vor.u32 %v426, %v427
    %v429 = vsub.s32 4294967266, %v424
    %v430 = vadd.s32 %v429, 127
    %v431 = vshll.u32 %v430, 23
    %v432 = vor.u32 4788187, %v431
    %v433 = vand.u32 2147483647, %v432
    %v435 = vcvt.s32.f32 %v428
    %v436 = vmul.f32 %v435, %v433
    %v437 = vxor.u32 %v436, 2147483648
    %v438 = vsel %vm355, %v437, %v436
    %v439 = vsub.s32 4, %v415
    %v440 = vsel %vm355, %v439, %v415
    %v441 = vsel %vm354, %v352, %v438
    %v442 = vsel %vm354, 0, %v440
    %v443 = vcosq.f32.pop %v441
    %v444 = vsinq.f32.pop %v441
    %vm445 = vweird.f32 %v352
    %v446 = vadd.s32 %v442, 3
    %v447 = vand.u32 %v446, 3
    %vm448 = vcmp.lt.s32.totalorder %v447, 2
    %vm449 = vcmp.eq.s32.totalorder %v447, 0
    %v450 = vxor.u32 %v444, 2147483648
    %v451 = vsel %vm449, %v443, %v450
    %vm452 = vcmp.eq.s32.totalorder %v447, 2
    %v453 = vxor.u32 %v443, 2147483648
    %v454 = vsel %vm452, %v453, %v444
    %v455 = vsel %vm448, %v451, %v454
    %v456 = vsel %vm445, nan, %v455
    %v457 = vmul.f32 %v456, 0.3413891
    %v458 = vadd.f32 %v351, %v457
    %v459 = vmul.f32 %v352, -0.4744189
    %v460 = vadd.f32 %v458, %v459
    %v461 = vld [vmem:[#allocation2 + $0x4] sm:$0x1]
    %v462 = vand.u32 2147483647, %v461
    %vm463 = vcmp.le.f32.partialorder %v462, 0.7853982
    %vm464 = vcmp.lt.s32.totalorder %v461, 0
    %v465 = vand.u32 %v461, 2139095040
    %v466 = vshrl.u32 %v465, 23
    %v467 = vsub.s32 %v466, 127
    %v468 = vand.u32 2147483647, %v461
    %v469 = vand.u32 %v468, 8388607
    %v470 = vor.u32 %v469, 8388608
    %v471 = vsub.s32 0, %v470
    %v472 = vadd.s32 %v467, 1
    %vm473 = vcmp.gt.s32.totalorder %v472, 0
    %v474 = vsel %vm473, %v472, 0
    %v475 = vshrl.u32 %v474, 5
    %v476 = vand.u32 %v474, 31
    %v477 = vsub.s32 32, %v476
    %v478 = vshrl.u32 683565275, %v477
    %v479 = vshll.u32 683565275, %v476
    %v480 = vshrl.u32 2475754826, %v477
    %v481 = vor.u32 %v479, %v480
    %v482 = vshll.u32 2475754826, %v476
    %v483 = vshrl.u32 2131351028, %v477
    %v484 = vor.u32 %v482, %v483
    %v485 = vshll.u32 2131351028, %v476
    %v486 = vshrl.u32 2102212464, %v477
    %v487 = vor.u32 %v485, %v486
    %v488 = vshll.u32 2102212464, %v476
    %v489 = vshrl.u32 920167782, %v477
    %v490 = vor.u32 %v488, %v489
    %v491 = vshll.u32 920167782, %v476
    %v492 = vshrl.u32 1326507024, %v477
    %v493 = vor.u32 %v491, %v492
    %vm494 = vcmp.lt.s32.totalorder %v475, 1
    %vm495 = vcmp.lt.s32.totalorder %v475, 2
    %vm496 = vcmp.lt.s32.totalorder %v475, 3
    %vm497 = vcmp.lt.s32.totalorder %v475, 4
    %v498 = vsel %vm494, %v478, %v481
    %v499 = vsel %vm497, %v487, 2102212464
    %v500 = vsel %vm496, %v484, %v499
    %v501 = vsel %vm495, %v498, %v500
    %v502 = vsel %vm494, %v481, %v484
    %v503 = vsel %vm497, %v490, 920167782
    %v504 = vsel %vm496, %v487, %v503
    %v505 = vsel %vm495, %v502, %v504
    %v506 = vsel %vm494, %v484, %v487
    %v507 = vsel %vm497, %v493, 1326507024
    %v508 = vsel %vm496, %v490, %v507
    %v509 = vsel %vm495, %v506, %v508
    %v510 = vshll.u32 %v470, 8
    %v511 = vmul.u32.u64.compose %v510, %v509
    %v512 = vextract.low.u32 %v511
    %v513 = vextract.high.u32 %v511
    %v514 = vmul.u32.u64.compose %v510, %v505
    %v515 = vextract.low.u32 %v514
    %v516 = vextract.high.u32 %v514
    %v517 = vmul.u32 %v510, %v501
    %v518 = vadd.s32 %v513, %v515
    %vm519 = vc.u32 %v513, %v515
    %v520 = vadd.s32 %v516, 1
    %v521 = vsel %vm519, %v520, %v516
    %v522 = vadd.s32 %v517, %v521
    %v523 = vadd.s32 %v522, 536870912
    %v524 = vshrl.u32 %v523, 30
    %v525 = vshll.u32 %v524, 30
    %v526 = vsub.s32 %v522, %v525
    %vm527 = vcmp.lt.s32.totalorder %v526, 0
    %v528 = vsub.s32 0, %v526
    %v529 = vsel %vm527, %v528, %v526
    %v530 = vclz %v529
    %v531 = vsub.s32 %v530, 2
    %vm532 = vcmp.gt.s32.totalorder 0, %v531
    %v533 = vsel %vm532, 0, %v531
    %v534 = vsub.s32 32, %v533
    %v535 = vshll.u32 %v526, %v533
    %v536 = vshrl.u32 %v518, %v534
    %v537 = vor.u32 %v535, %v536
    %v538 = vsub.s32 4294967266, %v533
    %v539 = vadd.s32 %v538, 127
    %v540 = vshll.u32 %v539, 23
    %v541 = vor.u32 4788187, %v540
    %v542 = vand.u32 2147483647, %v541
    %v544 = vcvt.s32.f32 %v537
    %v545 = vmul.f32 %v544, %v542
    %v546 = vxor.u32 %v545, 2147483648
    %v547 = vsel %vm464, %v546, %v545
    %v548 = vsub.s32 4, %v524
    %v549 = vsel %vm464, %v548, %v524
    %v550 = vsel %vm463, %v461, %v547
    %v551 = vsel %vm463, 0, %v549
    %v552 = vcosq.f32.pop %v550
    %v553 = vsinq.f32.pop %v550
    %vm554 = vweird.f32 %v461
    %v555 = vadd.s32 %v551, 3
    %v556 = vand.u32 %v555, 3
    %vm557 = vcmp.lt.s32.totalorder %v556, 2
    %vm558 = vcmp.eq.s32.totalorder %v556, 0
    %v559 = vxor.u32 %v553, 2147483648
    %v560 = vsel %vm558, %v552, %v559
    %vm561 = vcmp.eq.s32.totalorder %v556, 2
    %v562 = vxor.u32 %v552, 2147483648
    %v563 = vsel %vm561, %v562, %v553
    %v564 = vsel %vm557, %v560, %v563
    %v565 = vsel %vm554, nan, %v564
    %v566 = vmul.f32 %v565, 0.11427462
    %v567 = vadd.f32 %v460, %v566
    %v568 = vmul.f32 %v461, -0.08027598
    %v569 = vadd.f32 %v567, %v568
    %v570 = vld [vmem:[#allocation2 + $0x5] sm:$0x1]
    %v571 = vand.u32 2147483647, %v570
    %vm572 = vcmp.le.f32.partialorder %v571, 0.7853982
    %vm573 = vcmp.lt.s32.totalorder %v570, 0
    %v574 = vand.u32 %v570, 2139095040
    %v575 = vshrl.u32 %v574, 23
    %v576 = vsub.s32 %v575, 127
    %v577 = vand.u32 2147483647, %v570
    %v578 = vand.u32 %v577, 8388607
    %v579 = vor.u32 %v578, 8388608
    %v580 = vsub.s32 0, %v579
    %v581 = vadd.s32 %v576, 1
    %vm582 = vcmp.gt.s32.totalorder %v581, 0
    %v583 = vsel %vm582, %v581, 0
    %v584 = vshrl.u32 %v583, 5
    %v585 = vand.u32 %v583, 31
    %v586 = vsub.s32 32, %v585
    %v587 = vshrl.u32 683565275, %v586
    %v588 = vshll.u32 683565275, %v585
    %v589 = vshrl.u32 2475754826, %v586
    %v590 = vor.u32 %v588, %v589
    %v591 = vshll.u32 2475754826, %v585
    %v592 = vshrl.u32 2131351028, %v586
    %v593 = vor.u32 %v591, %v592
    %v594 = vshll.u32 2131351028, %v585
    %v595 = vshrl.u32 2102212464, %v586
    %v596 = vor.u32 %v594, %v595
    %v597 = vshll.u32 2102212464, %v585
    %v598 = vshrl.u32 920167782, %v586
    %v599 = vor.u32 %v597, %v598
    %v600 = vshll.u32 920167782, %v585
    %v601 = vshrl.u32 1326507024, %v586
    %v602 = vor.u32 %v600, %v601
    %vm603 = vcmp.lt.s32.totalorder %v584, 1
    %vm604 = vcmp.lt.s32.totalorder %v584, 2
    %vm605 = vcmp.lt.s32.totalorder %v584, 3
    %vm606 = vcmp.lt.s32.totalorder %v584, 4
    %v607 = vsel %vm603, %v587, %v590
    %v608 = vsel %vm606, %v596, 2102212464
    %v609 = vsel %vm605, %v593, %v608
    %v610 = vsel %vm604, %v607, %v609
    %v611 = vsel %vm603, %v590, %v593
    %v612 = vsel %vm606, %v599, 920167782
    %v613 = vsel %vm605, %v596, %v612
    %v614 = vsel %vm604, %v611, %v613
    %v615 = vsel %vm603, %v593, %v596
    %v616 = vsel %vm606, %v602, 1326507024
    %v617 = vsel %vm605, %v599, %v616
    %v618 = vsel %vm604, %v615, %v617
    %v619 = vshll.u32 %v579, 8
    %v620 = vmul.u32.u64.compose %v619, %v618
    %v621 = vextract.low.u32 %v620
    %v622 = vextract.high.u32 %v620
    %v623 = vmul.u32.u64.compose %v619, %v614
    %v624 = vextract.low.u32 %v623
    %v625 = vextract.high.u32 %v623
    %v626 = vmul.u32 %v619, %v610
    %v627 = vadd.s32 %v622, %v624
    %vm628 = vc.u32 %v622, %v624
    %v629 = vadd.s32 %v625, 1
    %v630 = vsel %vm628, %v629, %v625
    %v631 = vadd.s32 %v626, %v630
    %v632 = vadd.s32 %v631, 536870912
    %v633 = vshrl.u32 %v632, 30
    %v634 = vshll.u32 %v633, 30
    %v635 = vsub.s32 %v631, %v634
    %vm636 = vcmp.lt.s32.totalorder %v635, 0
    %v637 = vsub.s32 0, %v635
    %v638 = vsel %vm636, %v637, %v635
    %v639 = vclz %v638
    %v640 = vsub.s32 %v639, 2
    %vm641 = vcmp.gt.s32.totalorder 0, %v640
    %v642 = vsel %vm641, 0, %v640
    %v643 = vsub.s32 32, %v642
    %v644 = vshll.u32 %v635, %v642
    %v645 = vshrl.u32 %v627, %v643
    %v646 = vor.u32 %v644, %v645
    %v647 = vsub.s32 4294967266, %v642
    %v648 = vadd.s32 %v647, 127
    %v649 = vshll.u32 %v648, 23
    %v650 = vor.u32 4788187, %v649
    %v651 = vand.u32 2147483647, %v650
    %v653 = vcvt.s32.f32 %v646
    %v654 = vmul.f32 %v653, %v651
    %v655 = vxor.u32 %v654, 2147483648
    %v656 = vsel %vm573, %v655, %v654
    %v657 = vsub.s32 4, %v633
    %v658 = vsel %vm573, %v657, %v633
    %v659 = vsel %vm572, %v570, %v656
    %v660 = vsel %vm572, 0, %v658
    %v661 = vcosq.f32.pop %v659
    %v662 = vsinq.f32.pop %v659
    %vm663 = vweird.f32 %v570
    %v664 = vadd.s32 %v660, 3
    %v665 = vand.u32 %v664, 3
    %vm666 = vcmp.lt.s32.totalorder %v665, 2
    %vm667 = vcmp.eq.s32.totalorder %v665, 0
    %v668 = vxor.u32 %v662, 2147483648
    %v669 = vsel %vm667, %v661, %v668
    %vm670 = vcmp.eq.s32.totalorder %v665, 2
    %v671 = vxor.u32 %v661, 2147483648
    %v672 = vsel %vm670, %v671, %v662
    %v673 = vsel %vm666, %v669, %v672
    %v674 = vsel %vm663, nan, %v673
    %v675 = vmul.f32 %v674, 0.6046465
    %v676 = vadd.f32 %v569, %v675
    %v677 = vmul.f32 %v570, -0.009404492
    %v678 = vadd.f32 %v676, %v677
    %v679 = vld [vmem:[#allocation2 + $0x6] sm:$0x1]
    %v680 = vand.u32 2147483647, %v679
    %vm681 = vcmp.le.f32.partialorder %v680, 0.7853982
    %vm682 = vcmp.lt.s32.totalorder %v679, 0
    %v683 = vand.u32 %v679, 2139095040
    %v684 = vshrl.u32 %v683, 23
    %v685 = vsub.s32 %v684, 127
    %v686 = vand.u32 2147483647, %v679
    %v687 = vand.u32 %v686, 8388607
    %v688 = vor.u32 %v687, 8388608
    %v689 = vsub.s32 0, %v688
    %v690 = vadd.s32 %v685, 1
    %vm691 = vcmp.gt.s32.totalorder %v690, 0
    %v692 = vsel %vm691, %v690, 0
    %v693 = vshrl.u32 %v692, 5
    %v694 = vand.u32 %v692, 31
    %v695 = vsub.s32 32, %v694
    %v696 = vshrl.u32 683565275, %v695
    %v697 = vshll.u32 683565275, %v694
    %v698 = vshrl.u32 2475754826, %v695
    %v699 = vor.u32 %v697, %v698
    %v700 = vshll.u32 2475754826, %v694
    %v701 = vshrl.u32 2131351028, %v695
    %v702 = vor.u32 %v700, %v701
    %v703 = vshll.u32 2131351028, %v694
    %v704 = vshrl.u32 2102212464, %v695
    %v705 = vor.u32 %v703, %v704
    %v706 = vshll.u32 2102212464, %v694
    %v707 = vshrl.u32 920167782, %v695
    %v708 = vor.u32 %v706, %v707
    %v709 = vshll.u32 920167782, %v694
    %v710 = vshrl.u32 1326507024, %v695
    %v711 = vor.u32 %v709, %v710
    %vm712 = vcmp.lt.s32.totalorder %v693, 1
    %vm713 = vcmp.lt.s32.totalorder %v693, 2
    %vm714 = vcmp.lt.s32.totalorder %v693, 3
    %vm715 = vcmp.lt.s32.totalorder %v693, 4
    %v716 = vsel %vm712, %v696, %v699
    %v717 = vsel %vm715, %v705, 2102212464
    %v718 = vsel %vm714, %v702, %v717
    %v719 = vsel %vm713, %v716, %v718
    %v720 = vsel %vm712, %v699, %v702
    %v721 = vsel %vm715, %v708, 920167782
    %v722 = vsel %vm714, %v705, %v721
    %v723 = vsel %vm713, %v720, %v722
    %v724 = vsel %vm712, %v702, %v705
    %v725 = vsel %vm715, %v711, 1326507024
    %v726 = vsel %vm714, %v708, %v725
    %v727 = vsel %vm713, %v724, %v726
    %v728 = vshll.u32 %v688, 8
    %v729 = vmul.u32.u64.compose %v728, %v727
    %v730 = vextract.low.u32 %v729
    %v731 = vextract.high.u32 %v729
    %v732 = vmul.u32.u64.compose %v728, %v723
    %v733 = vextract.low.u32 %v732
    %v734 = vextract.high.u32 %v732
    %v735 = vmul.u32 %v728, %v719
    %v736 = vadd.s32 %v731, %v733
    %vm737 = vc.u32 %v731, %v733
    %v738 = vadd.s32 %v734, 1
    %v739 = vsel %vm737, %v738, %v734
    %v740 = vadd.s32 %v735, %v739
    %v741 = vadd.s32 %v740, 536870912
    %v742 = vshrl.u32 %v741, 30
    %v743 = vshll.u32 %v742, 30
    %v744 = vsub.s32 %v740, %v743
    %vm745 = vcmp.lt.s32.totalorder %v744, 0
    %v746 = vsub.s32 0, %v744
    %v747 = vsel %vm745, %v746, %v744
    %v748 = vclz %v747
    %v749 = vsub.s32 %v748, 2
    %vm750 = vcmp.gt.s32.totalorder 0, %v749
    %v751 = vsel %vm750, 0, %v749
    %v752 = vsub.s32 32, %v751
    %v753 = vshll.u32 %v744, %v751
    %v754 = vshrl.u32 %v736, %v752
    %v755 = vor.u32 %v753, %v754
    %v756 = vsub.s32 4294967266, %v751
    %v757 = vadd.s32 %v756, 127
    %v758 = vshll.u32 %v757, 23
    %v759 = vor.u32 4788187, %v758
    %v760 = vand.u32 2147483647, %v759
    %v762 = vcvt.s32.f32 %v755
    %v763 = vmul.f32 %v762, %v760
    %v764 = vxor.u32 %v763, 2147483648
    %v765 = vsel %vm682, %v764, %v763
    %v766 = vsub.s32 4, %v742
    %v767 = vsel %vm682, %v766, %v742
    %v768 = vsel %vm681, %v679, %v765
    %v769 = vsel %vm681, 0, %v767
    %v770 = vcosq.f32.pop %v768
    %v771 = vsinq.f32.pop %v768
    %vm772 = vweird.f32 %v679
    %v773 = vadd.s32 %v769, 3
    %v774 = vand.u32 %v773, 3
    %vm775 = vcmp.lt.s32.totalorder %v774, 2
    %vm776 = vcmp.eq.s32.totalorder %v774, 0
    %v777 = vxor.u32 %v771, 2147483648
    %v778 = vsel %vm776, %v770, %v777
    %vm779 = vcmp.eq.s32.totalorder %v774, 2
    %v780 = vxor.u32 %v770, 2147483648
    %v781 = vsel %vm779, %v780, %v771
    %v782 = vsel %vm775, %v778, %v781
    %v783 = vsel %vm772, nan, %v782
    %v784 = vmul.f32 %v783, 0.3841416
    %v785 = vadd.f32 %v678, %v784
    %v786 = vmul.f32 %v679, 0.10820398
    %v787 = vadd.f32 %v785, %v786
    %v788 = vld [vmem:[#allocation2 + $0x7] sm:$0x1]
    %v789 = vand.u32 2147483647, %v788
    %vm790 = vcmp.le.f32.partialorder %v789, 0.7853982
    %vm791 = vcmp.lt.s32.totalorder %v788, 0
    %v792 = vand.u32 %v788, 2139095040
    %v793 = vshrl.u32 %v792, 23
    %v794 = vsub.s32 %v793, 127
    %v795 = vand.u32 2147483647, %v788
    %v796 = vand.u32 %v795, 8388607
    %v797 = vor.u32 %v796, 8388608
    %v798 = vsub.s32 0, %v797
    %v799 = vadd.s32 %v794, 1
    %vm800 = vcmp.gt.s32.totalorder %v799, 0
    %v801 = vsel %vm800, %v799, 0
    %v802 = vshrl.u32 %v801, 5
    %v803 = vand.u32 %v801, 31
    %v804 = vsub.s32 32, %v803
    %v805 = vshrl.u32 683565275, %v804
    %v806 = vshll.u32 683565275, %v803
    %v807 = vshrl.u32 2475754826, %v804
    %v808 = vor.u32 %v806, %v807
    %v809 = vshll.u32 2475754826, %v803
    %v810 = vshrl.u32 2131351028, %v804
    %v811 = vor.u32 %v809, %v810
    %v812 = vshll.u32 2131351028, %v803
    %v813 = vshrl.u32 2102212464, %v804
    %v814 = vor.u32 %v812, %v813
    %v815 = vshll.u32 2102212464, %v803
    %v816 = vshrl.u32 920167782, %v804
    %v817 = vor.u32 %v815, %v816
    %v818 = vshll.u32 920167782, %v803
    %v819 = vshrl.u32 1326507024, %v804
    %v820 = vor.u32 %v818, %v819
    %vm821 = vcmp.lt.s32.totalorder %v802, 1
    %vm822 = vcmp.lt.s32.totalorder %v802, 2
    %vm823 = vcmp.lt.s32.totalorder %v802, 3
    %vm824 = vcmp.lt.s32.totalorder %v802, 4
    %v825 = vsel %vm821, %v805, %v808
    %v826 = vsel %vm824, %v814, 2102212464
    %v827 = vsel %vm823, %v811, %v826
    %v828 = vsel %vm822, %v825, %v827
    %v829 = vsel %vm821, %v808, %v811
    %v830 = vsel %vm824, %v817, 920167782
    %v831 = vsel %vm823, %v814, %v830
    %v832 = vsel %vm822, %v829, %v831
    %v833 = vsel %vm821, %v811, %v814
    %v834 = vsel %vm824, %v820, 1326507024
    %v835 = vsel %vm823, %v817, %v834
    %v836 = vsel %vm822, %v833, %v835
    %v837 = vshll.u32 %v797, 8
    %v838 = vmul.u32.u64.compose %v837, %v836
    %v839 = vextract.low.u32 %v838
    %v840 = vextract.high.u32 %v838
    %v841 = vmul.u32.u64.compose %v837, %v832
    %v842 = vextract.low.u32 %v841
    %v843 = vextract.high.u32 %v841
    %v844 = vmul.u32 %v837, %v828
    %v845 = vadd.s32 %v840, %v842
    %vm846 = vc.u32 %v840, %v842
    %v847 = vadd.s32 %v843, 1
    %v848 = vsel %vm846, %v847, %v843
    %v849 = vadd.s32 %v844, %v848
    %v850 = vadd.s32 %v849, 536870912
    %v851 = vshrl.u32 %v850, 30
    %v852 = vshll.u32 %v851, 30
    %v853 = vsub.s32 %v849, %v852
    %vm854 = vcmp.lt.s32.totalorder %v853, 0
    %v855 = vsub.s32 0, %v853
    %v856 = vsel %vm854, %v855, %v853
    %v857 = vclz %v856
    %v858 = vsub.s32 %v857, 2
    %vm859 = vcmp.gt.s32.totalorder 0, %v858
    %v860 = vsel %vm859, 0, %v858
    %v861 = vsub.s32 32, %v860
    %v862 = vshll.u32 %v853, %v860
    %v863 = vshrl.u32 %v845, %v861
    %v864 = vor.u32 %v862, %v863
    %v865 = vsub.s32 4294967266, %v860
    %v866 = vadd.s32 %v865, 127
    %v867 = vshll.u32 %v866, 23
    %v868 = vor.u32 4788187, %v867
    %v869 = vand.u32 2147483647, %v868
    %v871 = vcvt.s32.f32 %v864
    %v872 = vmul.f32 %v871, %v869
    %v873 = vxor.u32 %v872, 2147483648
    %v874 = vsel %vm791, %v873, %v872
    %v875 = vsub.s32 4, %v851
    %v876 = vsel %vm791, %v875, %v851
    %v877 = vsel %vm790, %v788, %v874
    %v878 = vsel %vm790, 0, %v876
    %v879 = vcosq.f32.pop %v877
    %v880 = vsinq.f32.pop %v877
    %vm881 = vweird.f32 %v788
    %v882 = vadd.s32 %v878, 3
    %v883 = vand.u32 %v882, 3
    %vm884 = vcmp.lt.s32.totalorder %v883, 2
    %vm885 = vcmp.eq.s32.totalorder %v883, 0
    %v886 = vxor.u32 %v880, 2147483648
    %v887 = vsel %vm885, %v879, %v886
    %vm888 = vcmp.eq.s32.totalorder %v883, 2
    %v889 = vxor.u32 %v879, 2147483648
    %v890 = vsel %vm888, %v889, %v880
    %v891 = vsel %vm884, %v887, %v890
    %v892 = vsel %vm881, nan, %v891
    %v893 = vmul.f32 %v892, 0.553903
    %v894 = vadd.f32 %v787, %v893
    %v895 = vmul.f32 %v788, 0.89051074
    %v896 = vadd.f32 %v894, %v895
    %v897 = vld [vmem:[#allocation2 + $0x8] sm:$0x1]
    %v898 = vand.u32 2147483647, %v897
    %vm899 = vcmp.le.f32.partialorder %v898, 0.7853982
    %vm900 = vcmp.lt.s32.totalorder %v897, 0
    %v901 = vand.u32 %v897, 2139095040
    %v902 = vshrl.u32 %v901, 23
    %v903 = vsub.s32 %v902, 127
    %v904 = vand.u32 2147483647, %v897
    %v905 = vand.u32 %v904, 8388607
    %v906 = vor.u32 %v905, 8388608
    %v907 = vsub.s32 0, %v906
    %v908 = vadd.s32 %v903, 1
    %vm909 = vcmp.gt.s32.totalorder %v908, 0
    %v910 = vsel %vm909, %v908, 0
    %v911 = vshrl.u32 %v910, 5
    %v912 = vand.u32 %v910, 31
    %v913 = vsub.s32 32, %v912
    %v914 = vshrl.u32 683565275, %v913
    %v915 = vshll.u32 683565275, %v912
    %v916 = vshrl.u32 2475754826, %v913
    %v917 = vor.u32 %v915, %v916
    %v918 = vshll.u32 2475754826, %v912
    %v919 = vshrl.u32 2131351028, %v913
    %v920 = vor.u32 %v918, %v919
    %v921 = vshll.u32 2131351028, %v912
    %v922 = vshrl.u32 2102212464, %v913
    %v923 = vor.u32 %v921, %v922
    %v924 = vshll.u32 2102212464, %v912
    %v925 = vshrl.u32 920167782, %v913
    %v926 = vor.u32 %v924, %v925
    %v927 = vshll.u32 920167782, %v912
    %v928 = vshrl.u32 1326507024, %v913
    %v929 = vor.u32 %v927, %v928
    %vm930 = vcmp.lt.s32.totalorder %v911, 1
    %vm931 = vcmp.lt.s32.totalorder %v911, 2
    %vm932 = vcmp.lt.s32.totalorder %v911, 3
    %vm933 = vcmp.lt.s32.totalorder %v911, 4
    %v934 = vsel %vm930, %v914, %v917
    %v935 = vsel %vm933, %v923, 2102212464
    %v936 = vsel %vm932, %v920, %v935
    %v937 = vsel %vm931, %v934, %v936
    %v938 = vsel %vm930, %v917, %v920
    %v939 = vsel %vm933, %v926, 920167782
    %v940 = vsel %vm932, %v923, %v939
    %v941 = vsel %vm931, %v938, %v940
    %v942 = vsel %vm930, %v920, %v923
    %v943 = vsel %vm933, %v929, 1326507024
    %v944 = vsel %vm932, %v926, %v943
    %v945 = vsel %vm931, %v942, %v944
    %v946 = vshll.u32 %v906, 8
    %v947 = vmul.u32.u64.compose %v946, %v945
    %v948 = vextract.low.u32 %v947
    %v949 = vextract.high.u32 %v947
    %v950 = vmul.u32.u64.compose %v946, %v941
    %v951 = vextract.low.u32 %v950
    %v952 = vextract.high.u32 %v950
    %v953 = vmul.u32 %v946, %v937
    %v954 = vadd.s32 %v949, %v951
    %vm955 = vc.u32 %v949, %v951
    %v956 = vadd.s32 %v952, 1
    %v957 = vsel %vm955, %v956, %v952
    %v958 = vadd.s32 %v953, %v957
    %v959 = vadd.s32 %v958, 536870912
    %v960 = vshrl.u32 %v959, 30
    %v961 = vshll.u32 %v960, 30
    %v962 = vsub.s32 %v958, %v961
    %vm963 = vcmp.lt.s32.totalorder %v962, 0
    %v964 = vsub.s32 0, %v962
    %v965 = vsel %vm963, %v964, %v962
    %v966 = vclz %v965
    %v967 = vsub.s32 %v966, 2
    %vm968 = vcmp.gt.s32.totalorder 0, %v967
    %v969 = vsel %vm968, 0, %v967
    %v970 = vsub.s32 32, %v969
    %v971 = vshll.u32 %v962, %v969
    %v972 = vshrl.u32 %v954, %v970
    %v973 = vor.u32 %v971, %v972
    %v974 = vsub.s32 4294967266, %v969
    %v975 = vadd.s32 %v974, 127
    %v976 = vshll.u32 %v975, 23
    %v977 = vor.u32 4788187, %v976
    %v978 = vand.u32 2147483647, %v977
    %v980 = vcvt.s32.f32 %v973
    %v981 = vmul.f32 %v980, %v978
    %v982 = vxor.u32 %v981, 2147483648
    %v983 = vsel %vm900, %v982, %v981
    %v984 = vsub.s32 4, %v960
    %v985 = vsel %vm900, %v984, %v960
    %v986 = vsel %vm899, %v897, %v983
    %v987 = vsel %vm899, 0, %v985
    %v988 = vcosq.f32.pop %v986
    %v989 = vsinq.f32.pop %v986
    %vm990 = vweird.f32 %v897
    %v991 = vadd.s32 %v987, 3
    %v992 = vand.u32 %v991, 3
    %vm993 = vcmp.lt.s32.totalorder %v992, 2
    %vm994 = vcmp.eq.s32.totalorder %v992, 0
    %v995 = vxor.u32 %v989, 2147483648
    %v996 = vsel %vm994, %v988, %v995
    %vm997 = vcmp.eq.s32.totalorder %v992, 2
    %v998 = vxor.u32 %v988, 2147483648
    %v999 = vsel %vm997, %v998, %v989
    %v1000 = vsel %vm993, %v996, %v999
    %v1001 = vsel %vm990, nan, %v1000
    %v1002 = vmul.f32 %v1001, 0.85628873
    %v1003 = vadd.f32 %v896, %v1002
    %v1004 = vmul.f32 %v897, 1.06068
    %v1005 = vadd.f32 %v1003, %v1004
    %v1006 = vld [vmem:[#allocation2 + $0x9] sm:$0x1]
    %v1007 = vand.u32 2147483647, %v1006
    %vm1008 = vcmp.le.f32.partialorder %v1007, 0.7853982
    %vm1009 = vcmp.lt.s32.totalorder %v1006, 0
    %v1010 = vand.u32 %v1006, 2139095040
    %v1011 = vshrl.u32 %v1010, 23
    %v1012 = vsub.s32 %v1011, 127
    %v1013 = vand.u32 2147483647, %v1006
    %v1014 = vand.u32 %v1013, 8388607
    %v1015 = vor.u32 %v1014, 8388608
    %v1016 = vsub.s32 0, %v1015
    %v1017 = vadd.s32 %v1012, 1
    %vm1018 = vcmp.gt.s32.totalorder %v1017, 0
    %v1019 = vsel %vm1018, %v1017, 0
    %v1020 = vshrl.u32 %v1019, 5
    %v1021 = vand.u32 %v1019, 31
    %v1022 = vsub.s32 32, %v1021
    %v1023 = vshrl.u32 683565275, %v1022
    %v1024 = vshll.u32 683565275, %v1021
    %v1025 = vshrl.u32 2475754826, %v1022
    %v1026 = vor.u32 %v1024, %v1025
    %v1027 = vshll.u32 2475754826, %v1021
    %v1028 = vshrl.u32 2131351028, %v1022
    %v1029 = vor.u32 %v1027, %v1028
    %v1030 = vshll.u32 2131351028, %v1021
    %v1031 = vshrl.u32 2102212464, %v1022
    %v1032 = vor.u32 %v1030, %v1031
    %v1033 = vshll.u32 2102212464, %v1021
    %v1034 = vshrl.u32 920167782, %v1022
    %v1035 = vor.u32 %v1033, %v1034
    %v1036 = vshll.u32 920167782, %v1021
    %v1037 = vshrl.u32 1326507024, %v1022
    %v1038 = vor.u32 %v1036, %v1037
    %vm1039 = vcmp.lt.s32.totalorder %v1020, 1
    %vm1040 = vcmp.lt.s32.totalorder %v1020, 2
    %vm1041 = vcmp.lt.s32.totalorder %v1020, 3
    %vm1042 = vcmp.lt.s32.totalorder %v1020, 4
    %v1043 = vsel %vm1039, %v1023, %v1026
    %v1044 = vsel %vm1042, %v1032, 2102212464
    %v1045 = vsel %vm1041, %v1029, %v1044
    %v1046 = vsel %vm1040, %v1043, %v1045
    %v1047 = vsel %vm1039, %v1026, %v1029
    %v1048 = vsel %vm1042, %v1035, 920167782
    %v1049 = vsel %vm1041, %v1032, %v1048
    %v1050 = vsel %vm1040, %v1047, %v1049
    %v1051 = vsel %vm1039, %v1029, %v1032
    %v1052 = vsel %vm1042, %v1038, 1326507024
    %v1053 = vsel %vm1041, %v1035, %v1052
    %v1054 = vsel %vm1040, %v1051, %v1053
    %v1055 = vshll.u32 %v1015, 8
    %v1056 = vmul.u32.u64.compose %v1055, %v1054
    %v1057 = vextract.low.u32 %v1056
    %v1058 = vextract.high.u32 %v1056
    %v1059 = vmul.u32.u64.compose %v1055, %v1050
    %v1060 = vextract.low.u32 %v1059
    %v1061 = vextract.high.u32 %v1059
    %v1062 = vmul.u32 %v1055, %v1046
    %v1063 = vadd.s32 %v1058, %v1060
    %vm1064 = vc.u32 %v1058, %v1060
    %v1065 = vadd.s32 %v1061, 1
    %v1066 = vsel %vm1064, %v1065, %v1061
    %v1067 = vadd.s32 %v1062, %v1066
    %v1068 = vadd.s32 %v1067, 536870912
    %v1069 = vshrl.u32 %v1068, 30
    %v1070 = vshll.u32 %v1069, 30
    %v1071 = vsub.s32 %v1067, %v1070
    %vm1072 = vcmp.lt.s32.totalorder %v1071, 0
    %v1073 = vsub.s32 0, %v1071
    %v1074 = vsel %vm1072, %v1073, %v1071
    %v1075 = vclz %v1074
    %v1076 = vsub.s32 %v1075, 2
    %vm1077 = vcmp.gt.s32.totalorder 0, %v1076
    %v1078 = vsel %vm1077, 0, %v1076
    %v1079 = vsub.s32 32, %v1078
    %v1080 = vshll.u32 %v1071, %v1078
    %v1081 = vshrl.u32 %v1063, %v1079
    %v1082 = vor.u32 %v1080, %v1081
    %v1083 = vsub.s32 4294967266, %v1078
    %v1084 = vadd.s32 %v1083, 127
    %v1085 = vshll.u32 %v1084, 23
    %v1086 = vor.u32 4788187, %v1085
    %v1087 = vand.u32 2147483647, %v1086
    %v1089 = vcvt.s32.f32 %v1082
    %v1090 = vmul.f32 %v1089, %v1087
    %v1091 = vxor.u32 %v1090, 2147483648
    %v1092 = vsel %vm1009, %v1091, %v1090
    %v1093 = vsub.s32 4, %v1069
    %v1094 = vsel %vm1009, %v1093, %v1069
    %v1095 = vsel %vm1008, %v1006, %v1092
    %v1096 = vsel %vm1008, 0, %v1094
    %v1097 = vcosq.f32.pop %v1095
    %v1098 = vsinq.f32.pop %v1095
    %vm1099 = vweird.f32 %v1006
    %v1100 = vadd.s32 %v1096, 3
    %v1101 = vand.u32 %v1100, 3
    %vm1102 = vcmp.lt.s32.totalorder %v1101, 2
    %vm1103 = vcmp.eq.s32.totalorder %v1101, 0
    %v1104 = vxor.u32 %v1098, 2147483648
    %v1105 = vsel %vm1103, %v1097, %v1104
    %vm1106 = vcmp.eq.s32.totalorder %v1101, 2
    %v1107 = vxor.u32 %v1097, 2147483648
    %v1108 = vsel %vm1106, %v1107, %v1098
    %v1109 = vsel %vm1102, %v1105, %v1108
    %v1110 = vsel %vm1099, nan, %v1109
    %v1111 = vmul.f32 %v1110, 0.6727711
    %v1112 = vadd.f32 %v1005, %v1111
    %v1113 = vmul.f32 %v1006, 0.9743392
    %v1114 = vadd.f32 %v1112, %v1113
    %1115 = vst [vmem:[#allocation5] sm:$0x1] %v1114
    // Predicated region
    $region10: #{tpu_custom_call.1} parent=1 // pred_check
      _
    $region11: #{tpu_custom_call.1} parent=1 // pred_check_branch
      %1117 = sbr.rel (0) target = $region13
    $region12: #{tpu_custom_call.1} parent=1 // pred_region
      %s1119 = ssub.s32 16, 16
      %1120 = vsyncadd [#allocation4], %s1119
      %s1122 = sshll.u32 [#allocation5], 4
      %s1123 = int_to_ptr.vmem [resolvable:$true] %s1122
      %1125 = dma.vmem_to_hbm [thread:$0]  %s1123, 16, %s1, [#allocation4]
    $region13: #{tpu_custom_call.1} parent=1 // pred_fallthru
      _
    // Predicated region
    $region14: #{tpu_custom_call.1} parent=1 // pred_check
      _
    $region15: #{tpu_custom_call.1} parent=1 // pred_check_branch
      %1127 = sbr.rel (0) target = $region17
    $region16: #{tpu_custom_call.1} parent=1 // pred_region
      %1128 = dma.done [#allocation4], 16
    $region17: #{tpu_custom_call.1} parent=1 // pred_fallthru
      _
    %1129 = vsyncpa [#allocation3], 1
    %1130 = vsyncpa [#allocation4], 1

</llo_original>
